<compile_context>
chip_gen: v5e
topology: v5e:2x2
jax: 0.10.0
libtpu: 0.0.40
codegen_flags: <defaults>
</compile_context>

<pallas_src>
import functools

import jax
import jax.numpy as jnp
from jax import lax
from jax.experimental import pallas as pl
from jax.experimental.pallas import tpu as pltpu

H1, H2, H3 = 128, 64, 8  # per-encoder hidden sizes (as in the PyTorch module)


def _critic_fused_kernel(b1, b2, x_dim, y_dim,
                         t1_ref, t2_ref, w1_ref, w2_ref, w3_ref, bias_ref,
                         out_ref, xy_scr):
    # t1_ref  : [b1, x_dim]           thing1
    # t2_ref  : [b2, y_dim]           thing2
    # w1_ref  : [D, 2*H1]             [w1a | w1b]          (D = max(x_dim, y_dim))
    # w2_ref  : [2*H1, 2*H2]          blockdiag(w2a, w2b)
    # w3_ref  : [2*H2, 2*H3]          blockdiag(w3a, w3b)
    # bias_ref: [1, 2*(H1+H2+H3)]     [b1a|b1b | b2a|b2b | b3a|b3b]
    # xy_scr  : [b1+b2, D]            VMEM scratch holding the stacked batch
    d = xy_scr.shape[1]
    o1 = 2 * H1            # 256
    o2 = o1 + 2 * H2       # 384

    # Stack [thing1; thing2] (with zero feature padding if x_dim != y_dim)
    # directly in VMEM — avoids a host-side pad/concat op.
    if x_dim < d or y_dim < d:
        xy_scr[...] = jnp.zeros_like(xy_scr)
    xy_scr[0:b1, 0:x_dim] = t1_ref[...]
    xy_scr[b1:b1 + b2, 0:y_dim] = t2_ref[...]

    h = jnp.dot(xy_scr[...], w1_ref[...], preferred_element_type=jnp.float32)
    h = jnp.maximum(h + bias_ref[:, 0:o1], 0.0)
    h = jnp.dot(h, w2_ref[...], preferred_element_type=jnp.float32)
    h = jnp.maximum(h + bias_ref[:, o1:o2], 0.0)
    e = jnp.dot(h, w3_ref[...], preferred_element_type=jnp.float32)
    e = e + bias_ref[:, o2:o2 + 2 * H3]

    # Static slices kill the cross-encoder (off-diagonal) garbage columns:
    #   rows 0:b1, cols 0:H3     == encoder1(thing1)
    #   rows b1:,  cols H3:2*H3  == encoder2(thing2)
    e1 = e[:b1, 0:H3]
    e2 = e[b1:, H3:2 * H3]

    # scores = encoded1 @ encoded2.T, transpose folded into the contraction.
    out_ref[...] = lax.dot_general(
        e1, e2,
        dimension_numbers=(((1,), (1,)), ((), ())),
        preferred_element_type=jnp.float32)


def _block_diag(a, b):
    r1, c1 = a.shape
    r2, c2 = b.shape
    out = jnp.zeros((r1 + r2, c1 + c2), a.dtype)
    out = out.at[:r1, :c1].set(a)
    out = out.at[r1:, c1:].set(b)
    return out


def fuse_params(params, x_dim, y_dim):
    """Pack the 12 per-layer tensors into 4 fused buffers (done once, host side)."""
    d = max(x_dim, y_dim)
    w1 = jnp.zeros((d, 2 * H1), jnp.float32)
    w1 = w1.at[:x_dim, :H1].set(params["w1a"])
    w1 = w1.at[:y_dim, H1:].set(params["w1b"])
    w2 = _block_diag(params["w2a"], params["w2b"])
    w3 = _block_diag(params["w3a"], params["w3b"])
    bias = jnp.concatenate(
        [params["b1a"], params["b1b"],
         params["b2a"], params["b2b"],
         params["b3a"], params["b3b"]], axis=1)
    return {"w1": w1, "w2": w2, "w3": w3, "bias": bias}


def test_critic1_forward(thing1, thing2, fused):
    """scores = encoder1(thing1) @ encoder2(thing2).T via one fused Pallas kernel."""
    b1, x_dim = thing1.shape
    b2, y_dim = thing2.shape
    d = fused["w1"].shape[0]

    vmem = pl.BlockSpec(memory_space=pltpu.MemorySpace.VMEM)
    kernel = functools.partial(_critic_fused_kernel, b1, b2, x_dim, y_dim)
    return pl.pallas_call(
        kernel,
        out_shape=jax.ShapeDtypeStruct((b1, b2), jnp.float32),
        in_specs=[vmem] * 6,
        out_specs=vmem,
        scratch_shapes=[pltpu.VMEM((b1 + b2, d), jnp.float32)],
    )(thing1, thing2, fused["w1"], fused["w2"], fused["w3"], fused["bias"])


def init_params(key, x_dim, y_dim):
    """Deterministic init mimicking nn.Linear's U(-1/sqrt(in), 1/sqrt(in)).

    Weights are stored as [in, out] (transposed vs PyTorch), biases as [1, out].
    """
    dims_a = [(x_dim, H1), (H1, H2), (H2, H3)]
    dims_b = [(y_dim, H1), (H1, H2), (H2, H3)]
    params = {}
    keys = jax.random.split(key, 12)
    ki = 0
    for tag, dims in (("a", dims_a), ("b", dims_b)):
        for li, (din, dout) in enumerate(dims, start=1):
            bound = 1.0 / (din ** 0.5)
            params[f"w{li}{tag}"] = jax.random.uniform(
                keys[ki], (din, dout), jnp.float32, -bound, bound)
            ki += 1
            params[f"b{li}{tag}"] = jax.random.uniform(
                keys[ki], (1, dout), jnp.float32, -bound, bound)
            ki += 1
    return params


def _reference_forward(thing1, thing2, p):
    def mlp(v, w1, b1, w2, b2, w3, b3):
        h = jnp.maximum(v @ w1 + b1, 0.0)
        h = jnp.maximum(h @ w2 + b2, 0.0)
        return h @ w3 + b3
    e1 = mlp(thing1, p["w1a"], p["b1a"], p["w2a"], p["b2a"], p["w3a"], p["b3a"])
    e2 = mlp(thing2, p["w1b"], p["b1b"], p["w2b"], p["b2b"], p["w3b"], p["b3b"])
    return e1 @ e2.T


if __name__ == "__main__":
    key = jax.random.PRNGKey(0)
    k_x, k_y, k_p = jax.random.split(key, 3)

    x_dim, y_dim = 32, 32
    batch1, batch2 = 8, 8

    thing1 = jax.random.normal(k_x, (batch1, x_dim), jnp.float32)
    thing2 = jax.random.normal(k_y, (batch2, y_dim), jnp.float32)
    params = init_params(k_p, x_dim, y_dim)
    fused = fuse_params(params, x_dim, y_dim)   # packed once, reused per call

    scores = test_critic1_forward(thing1, thing2, fused)
    scores = jax.block_until_ready(scores)

    ref = _reference_forward(thing1, thing2, params)
    assert scores.shape == (batch1, batch2)
    assert jnp.allclose(scores, ref, atol=1e-4, rtol=1e-4)

    print("KERNEL_OK")
</pallas_src>

<mosaic_0001>
module attributes {stable_mosaic.version = 11 : i64} {
  func.func @_critic_fused_kernel(%arg0: memref<8x32xf32, #tpu.memory_space<vmem>>, %arg1: memref<8x32xf32, #tpu.memory_space<vmem>>, %arg2: memref<32x256xf32, #tpu.memory_space<vmem>>, %arg3: memref<256x128xf32, #tpu.memory_space<vmem>>, %arg4: memref<128x16xf32, #tpu.memory_space<vmem>>, %arg5: memref<1x400xf32, #tpu.memory_space<vmem>>, %arg6: memref<8x8xf32, #tpu.memory_space<vmem>>, %arg7: memref<16x32xf32, #tpu.memory_space<vmem>>) attributes {dimension_semantics = [], scalar_prefetch = 0 : i64, scratch_operands = 1 : i64, tpu.core_type = #tpu.core_type<tc>} {
    %c0 = arith.constant 0 : index
    %c0_0 = arith.constant 0 : index
    %0 = vector.load %arg0[%c0, %c0_0] : memref<8x32xf32, #tpu.memory_space<vmem>>, vector<8x32xf32>
    %c0_1 = arith.constant 0 : index
    %c0_2 = arith.constant 0 : index
    %1 = vector.load %arg7[%c0_1, %c0_2] : memref<16x32xf32, #tpu.memory_space<vmem>>, vector<8x32xf32>
    tpu.vector_store %arg7[%c0_1, %c0_2], %0 {strides = array<i32>} : memref<16x32xf32, #tpu.memory_space<vmem>>, vector<8x32xf32>,
    %c0_3 = arith.constant 0 : index
    %c0_4 = arith.constant 0 : index
    %2 = vector.load %arg1[%c0_3, %c0_4] : memref<8x32xf32, #tpu.memory_space<vmem>>, vector<8x32xf32>
    %c8 = arith.constant 8 : index
    %c0_5 = arith.constant 0 : index
    %3 = vector.load %arg7[%c8, %c0_5] : memref<16x32xf32, #tpu.memory_space<vmem>>, vector<8x32xf32>
    tpu.vector_store %arg7[%c8, %c0_5], %2 {strides = array<i32>} : memref<16x32xf32, #tpu.memory_space<vmem>>, vector<8x32xf32>,
    %c0_6 = arith.constant 0 : index
    %c0_7 = arith.constant 0 : index
    %4 = vector.load %arg7[%c0_6, %c0_7] : memref<16x32xf32, #tpu.memory_space<vmem>>, vector<16x32xf32>
    %c0_8 = arith.constant 0 : index
    %c0_9 = arith.constant 0 : index
    %5 = vector.load %arg2[%c0_8, %c0_9] : memref<32x256xf32, #tpu.memory_space<vmem>>, vector<32x256xf32>
    %cst = arith.constant dense<0.000000e+00> : vector<16x256xf32>
    %6 = tpu.matmul %4, %5, %cst {dimension_numbers = #tpu.dot_dimension_numbers<[1], [0], [0], [1], [0, 0, 1, 1], [], []>} : vector<16x32xf32>, vector<32x256xf32>, vector<16x256xf32> -> vector<16x256xf32>
    %c0_10 = arith.constant 0 : index
    %c0_11 = arith.constant 0 : index
    %7 = vector.load %arg5[%c0_10, %c0_11] : memref<1x400xf32, #tpu.memory_space<vmem>>, vector<1x256xf32>
    %8 = vector.broadcast %7 : vector<1x256xf32> to vector<16x256xf32>
    %9 = arith.addf %6, %8 : vector<16x256xf32>
    %cst_12 = arith.constant 0.000000e+00 : f32
    %10 = vector.broadcast %cst_12 : f32 to vector<16x256xf32>
    %11 = arith.maximumf %9, %10 : vector<16x256xf32>
    %c0_13 = arith.constant 0 : index
    %c0_14 = arith.constant 0 : index
    %12 = vector.load %arg3[%c0_13, %c0_14] : memref<256x128xf32, #tpu.memory_space<vmem>>, vector<256x128xf32>
    %cst_15 = arith.constant dense<0.000000e+00> : vector<16x128xf32>
    %13 = tpu.matmul %11, %12, %cst_15 {dimension_numbers = #tpu.dot_dimension_numbers<[1], [0], [0], [1], [0, 0, 1, 1], [], []>} : vector<16x256xf32>, vector<256x128xf32>, vector<16x128xf32> -> vector<16x128xf32>
    %c0_16 = arith.constant 0 : index
    %c256 = arith.constant 256 : index
    %14 = vector.load %arg5[%c0_16, %c256] : memref<1x400xf32, #tpu.memory_space<vmem>>, vector<1x128xf32>
    %15 = vector.broadcast %14 : vector<1x128xf32> to vector<16x128xf32>
    %16 = arith.addf %13, %15 : vector<16x128xf32>
    %cst_17 = arith.constant 0.000000e+00 : f32
    %17 = vector.broadcast %cst_17 : f32 to vector<16x128xf32>
    %18 = arith.maximumf %16, %17 : vector<16x128xf32>
    %c0_18 = arith.constant 0 : index
    %c0_19 = arith.constant 0 : index
    %19 = vector.load %arg4[%c0_18, %c0_19] : memref<128x16xf32, #tpu.memory_space<vmem>>, vector<128x16xf32>
    %cst_20 = arith.constant dense<0.000000e+00> : vector<16x16xf32>
    %20 = tpu.matmul %18, %19, %cst_20 {dimension_numbers = #tpu.dot_dimension_numbers<[1], [0], [0], [1], [0, 0, 1, 1], [], []>} : vector<16x128xf32>, vector<128x16xf32>, vector<16x16xf32> -> vector<16x16xf32>
    %c0_21 = arith.constant 0 : index
    %c384 = arith.constant 384 : index
    %21 = vector.load %arg5[%c0_21, %c384] : memref<1x400xf32, #tpu.memory_space<vmem>>, vector<1x16xf32>
    %22 = vector.broadcast %21 : vector<1x16xf32> to vector<16x16xf32>
    %23 = arith.addf %20, %22 : vector<16x16xf32>
    %24 = vector.extract_strided_slice %23 {offsets = [0, 0], sizes = [8, 8], strides = [1, 1]} : vector<16x16xf32> to vector<8x8xf32>
    %25 = vector.extract_strided_slice %23 {offsets = [8, 8], sizes = [8, 8], strides = [1, 1]} : vector<16x16xf32> to vector<8x8xf32>
    %cst_22 = arith.constant dense<0.000000e+00> : vector<8x8xf32>
    %26 = tpu.matmul %24, %25, %cst_22 {dimension_numbers = #tpu.dot_dimension_numbers<[1], [1], [0], [0], [0, 0, 1, 0], [], []>} : vector<8x8xf32>, vector<8x8xf32>, vector<8x8xf32> -> vector<8x8xf32>
    %c0_23 = arith.constant 0 : index
    %c0_24 = arith.constant 0 : index
    %27 = vector.load %arg6[%c0_23, %c0_24] : memref<8x8xf32, #tpu.memory_space<vmem>>, vector<8x8xf32>
    tpu.vector_store %arg6[%c0_23, %c0_24], %26 {strides = array<i32>} : memref<8x8xf32, #tpu.memory_space<vmem>>, vector<8x8xf32>,
    return
  }
}

</mosaic_0001>

<llo_original>
// kernel: tpu_custom_call.1
$region0: #{tpu_custom_call.1}
  #allocation0 [shape = 'u32[]', space=smem, size = 0x4, offset = 0x4, fixed_abs, tag = 'smem constant byte address 0x4 - core index']
  #allocation1 [shape = 'u32[72,128]{1,0:T(1,128)}', space=vmem, size = 0x9000, scoped, tag = 'internal scratch']
  #allocation2 [shape = 'f32[16,32]{1,0:T(8,128)}', space=vmem, size = 0x2000, scoped, tag = 'scratch operand']
  %s0 = inlined_call_operand.vmem [shape: f32[8,32], index: 0, kind: input, shape index: {}]
  %s1 = inlined_call_operand.vmem [shape: f32[8,32], index: 1, kind: input, shape index: {}]
  %s2 = inlined_call_operand.vmem [shape: f32[32,256], index: 2, kind: input, shape index: {}]
  %s3 = inlined_call_operand.hbm [shape: f32[256,128], index: 3, kind: input, shape index: {}]
  %s4 = inlined_call_operand.vmem [shape: f32[128,16], index: 4, kind: input, shape index: {}]
  %s5 = inlined_call_operand.vmem [shape: f32[1,400], index: 5, kind: input, shape index: {}]
  %s6 = inlined_call_operand.hbm [shape: f32[8,8], index: 6, kind: output, shape index: {}]
  %s7 = sld [smem:[#allocation0]]
  $region38: #{tpu_custom_call.1} parent=0
    _
  %s9 = ssub.s32 1, %s7
  %s10 = scalar_select 0, %s9, %s7
  $region1: #{tpu_custom_call.1} parent=0
    #allocation3 [shape = 'u8[131072]{0}', space=vmem, size = 0x20000, scoped, tag = 'input window, operand 3, single buffered']
    #allocation4 [shape = 's32[1]{0}', space=sflag, size = 0x4, scoped, tag = 'scoped memory for tpu_custom_call.1']
    #allocation5 [shape = 's32[1]{0}', space=sflag, size = 0x4, scoped, tag = 'scoped memory for tpu_custom_call.1']
    #allocation6 [shape = 'u8[4096]{0}', space=vmem, size = 0x1000, scoped, tag = 'output window, operand 0, single buffered']
    %11 = vsyncpa [#allocation4], 0
    %12 = vsyncpa [#allocation5], 0
    // Predicated region
    $region2: #{tpu_custom_call.1} parent=1 // pred_check
      _
    $region3: #{tpu_custom_call.1} parent=1 // pred_check_branch
      %14 = sbr.rel (0) target = $region5
    $region4: #{tpu_custom_call.1} parent=1 // pred_region
      _
    $region5: #{tpu_custom_call.1} parent=1 // pred_fallthru
      _
    // Predicated region
    $region6: #{tpu_custom_call.1} parent=1 // pred_check
      _
    $region7: #{tpu_custom_call.1} parent=1 // pred_check_branch
      %16 = sbr.rel (0) target = $region9
    $region8: #{tpu_custom_call.1} parent=1 // pred_region
      _
    $region9: #{tpu_custom_call.1} parent=1 // pred_fallthru
      _
    // Predicated region
    $region10: #{tpu_custom_call.1} parent=1 // pred_check
      _
    $region11: #{tpu_custom_call.1} parent=1 // pred_check_branch
      %18 = sbr.rel (0) target = $region13
    $region12: #{tpu_custom_call.1} parent=1 // pred_region
      _
    $region13: #{tpu_custom_call.1} parent=1 // pred_fallthru
      _
    // Predicated region
    $region14: #{tpu_custom_call.1} parent=1 // pred_check
      _
    $region15: #{tpu_custom_call.1} parent=1 // pred_check_branch
      %20 = sbr.rel (0) target = $region17
    $region16: #{tpu_custom_call.1} parent=1 // pred_region
      %22 = vsyncadd [#allocation4], 0
      %s23 = sshll.u32 %s3, 4
      %s24 = int_to_ptr.hbm [resolvable:$true] %s23
      %s25 = sshll.u32 [#allocation3], 4
      %s26 = int_to_ptr.vmem [resolvable:$true] %s25
      %31 = dma.hbm_to_vmem [thread:$0]  %s24, 4096, %s26, [#allocation4], 128, 128, 8
    $region17: #{tpu_custom_call.1} parent=1 // pred_fallthru
      _
    // Predicated region
    $region18: #{tpu_custom_call.1} parent=1 // pred_check
      _
    $region19: #{tpu_custom_call.1} parent=1 // pred_check_branch
      %33 = sbr.rel (0) target = $region21
    $region20: #{tpu_custom_call.1} parent=1 // pred_region
      _
    $region21: #{tpu_custom_call.1} parent=1 // pred_fallthru
      _
    // Predicated region
    $region22: #{tpu_custom_call.1} parent=1 // pred_check
      _
    $region23: #{tpu_custom_call.1} parent=1 // pred_check_branch
      %35 = sbr.rel (0) target = $region25
    $region24: #{tpu_custom_call.1} parent=1 // pred_region
      _
    $region25: #{tpu_custom_call.1} parent=1 // pred_fallthru
      _
    // Predicated region
    $region26: #{tpu_custom_call.1} parent=1 // pred_check
      _
    $region27: #{tpu_custom_call.1} parent=1 // pred_check_branch
      %37 = sbr.rel (0) target = $region29
    $region28: #{tpu_custom_call.1} parent=1 // pred_region
      %39 = dma.done [#allocation4], 4096
    $region29: #{tpu_custom_call.1} parent=1 // pred_fallthru
      _
    %v40 = vld [vmem:[%s0] sm:$0xff]
    %vm41 = vcmask 261120
    %42 = vst.msk [vmem:[#allocation2] sm:$0xff] %vm41, %v40
    %v43 = vld [vmem:[%s1] sm:$0xff]
    %44 = vst.msk [vmem:[#allocation2 + $0x8] sm:$0xff] %vm41, %v43
    %v45 = vld [vmem:[#allocation2] sm:$0xff]
    %v46 = vld [vmem:[#allocation2 + $0x8] sm:$0xff]
    %v47 = vld [vmem:[%s2] sm:$0xff]
    %v48 = vld [vmem:[%s2 + $0x8] sm:$0xff]
    %v49 = vld [vmem:[%s2 + $0x10] sm:$0xff]
    %v50 = vld [vmem:[%s2 + $0x18] sm:$0xff]
    %v51 = vld [vmem:[%s2 + $0x20] sm:$0xff]
    %v52 = vld [vmem:[%s2 + $0x28] sm:$0xff]
    %v53 = vld [vmem:[%s2 + $0x30] sm:$0xff]
    %v54 = vld [vmem:[%s2 + $0x38] sm:$0xff]
    %v55 = vld [vmem:[%s5] sm:$0x3]
    %v57 = vperm.slane %v55, 0
    %v58 = vperm.slane %v55, 1
    %v62 = vsel %vm41, %v45, 0
    %v65 = vsel %vm41, %v46, 0
    %67 = vmatpush.msra.mxu0 0.0
    %68 = vmatpush.msra.mxu0 0.0
    %69 = vmatpush.msra.mxu0 0.0
    %70 = vmatpush.msra.mxu0 0.0
    %71 = vmatpush.msra.mxu0 0.0
    %72 = vmatpush.msra.mxu0 0.0
    %73 = vmatpush.msra.mxu0 0.0
    %74 = vmatpush.msra.mxu0 0.0
    %75 = vmatpush.msra.mxu0 0.0
    %76 = vmatpush.msra.mxu0 0.0
    %77 = vmatpush.msra.mxu0 0.0
    %78 = vmatpush.msra.mxu0 0.0
    %79 = vmatpush.msra.mxu0 %v53
    %80 = vmatpush.msra.mxu0 %v51
    %81 = vmatpush.msra.mxu0 %v49
    %82 = vmatpush.msra.mxu0 %v47
    %83 = vmatmul.f32.gmra.mxu0 %v62
    %v84 = vpop.f32.mrf.mxu0
    %v85 = vadd.f32 %v57, %v84
    %86 = vmatmul.f32.gmra.mxu0 %v65
    %v87 = vpop.f32.mrf.mxu0
    %v88 = vadd.f32 %v57, %v87
    %89 = vdwg.mxu0
    %90 = vmatpush.msra.mxu0 0.0
    %91 = vmatpush.msra.mxu0 0.0
    %92 = vmatpush.msra.mxu0 0.0
    %93 = vmatpush.msra.mxu0 0.0
    %94 = vmatpush.msra.mxu0 0.0
    %95 = vmatpush.msra.mxu0 0.0
    %96 = vmatpush.msra.mxu0 0.0
    %97 = vmatpush.msra.mxu0 0.0
    %98 = vmatpush.msra.mxu0 0.0
    %99 = vmatpush.msra.mxu0 0.0
    %100 = vmatpush.msra.mxu0 0.0
    %101 = vmatpush.msra.mxu0 0.0
    %102 = vmatpush.msra.mxu0 %v54
    %103 = vmatpush.msra.mxu0 %v52
    %104 = vmatpush.msra.mxu0 %v50
    %105 = vmatpush.msra.mxu0 %v48
    %106 = vmatmul.f32.gmra.mxu0 %v62
    %v107 = vpop.f32.mrf.mxu0
    %v108 = vadd.f32 %v58, %v107
    %109 = vmatmul.f32.gmra.mxu0 %v65
    %v110 = vpop.f32.mrf.mxu0
    %v111 = vadd.f32 %v58, %v110
    %112 = vdwg.mxu0
    %v113 = vmax.f32 %v85, 0.0
    %v114 = vmax.f32 %v108, 0.0
    %v115 = vmax.f32 %v88, 0.0
    %v116 = vmax.f32 %v111, 0.0
    %v117 = vld [vmem:[#allocation3] sm:$0xff]
    %v118 = vld [vmem:[#allocation3 + $0x8] sm:$0xff]
    %v119 = vld [vmem:[#allocation3 + $0x10] sm:$0xff]
    %v120 = vld [vmem:[#allocation3 + $0x18] sm:$0xff]
    %v121 = vld [vmem:[#allocation3 + $0x20] sm:$0xff]
    %v122 = vld [vmem:[#allocation3 + $0x28] sm:$0xff]
    %v123 = vld [vmem:[#allocation3 + $0x30] sm:$0xff]
    %v124 = vld [vmem:[#allocation3 + $0x38] sm:$0xff]
    %v125 = vld [vmem:[#allocation3 + $0x40] sm:$0xff]
    %v126 = vld [vmem:[#allocation3 + $0x48] sm:$0xff]
    %v127 = vld [vmem:[#allocation3 + $0x50] sm:$0xff]
    %v128 = vld [vmem:[#allocation3 + $0x58] sm:$0xff]
    %v129 = vld [vmem:[#allocation3 + $0x60] sm:$0xff]
    %v130 = vld [vmem:[#allocation3 + $0x68] sm:$0xff]
    %v131 = vld [vmem:[#allocation3 + $0x70] sm:$0xff]
    %v132 = vld [vmem:[#allocation3 + $0x78] sm:$0xff]
    %v133 = vld [vmem:[#allocation3 + $0x80] sm:$0xff]
    %v134 = vld [vmem:[#allocation3 + $0x88] sm:$0xff]
    %v135 = vld [vmem:[#allocation3 + $0x90] sm:$0xff]
    %v136 = vld [vmem:[#allocation3 + $0x98] sm:$0xff]
    %v137 = vld [vmem:[#allocation3 + $0xa0] sm:$0xff]
    %v138 = vld [vmem:[#allocation3 + $0xa8] sm:$0xff]
    %v139 = vld [vmem:[#allocation3 + $0xb0] sm:$0xff]
    %v140 = vld [vmem:[#allocation3 + $0xb8] sm:$0xff]
    %v141 = vld [vmem:[#allocation3 + $0xc0] sm:$0xff]
    %v142 = vld [vmem:[#allocation3 + $0xc8] sm:$0xff]
    %v143 = vld [vmem:[#allocation3 + $0xd0] sm:$0xff]
    %v144 = vld [vmem:[#allocation3 + $0xd8] sm:$0xff]
    %v145 = vld [vmem:[#allocation3 + $0xe0] sm:$0xff]
    %v146 = vld [vmem:[#allocation3 + $0xe8] sm:$0xff]
    %v147 = vld [vmem:[#allocation3 + $0xf0] sm:$0xff]
    %v148 = vld [vmem:[#allocation3 + $0xf8] sm:$0xff]
    %v149 = vld [vmem:[%s5 + $0x2] sm:$0x1]
    %v151 = vperm.slane %v149, 0
    %153 = vmatpush.msra.mxu0 %v132
    %154 = vmatpush.msra.mxu0 %v131
    %155 = vmatpush.msra.mxu0 %v130
    %156 = vmatpush.msra.mxu0 %v129
    %157 = vmatpush.msra.mxu0 %v128
    %158 = vmatpush.msra.mxu0 %v127
    %159 = vmatpush.msra.mxu0 %v126
    %160 = vmatpush.msra.mxu0 %v125
    %161 = vmatpush.msra.mxu0 %v124
    %162 = vmatpush.msra.mxu0 %v123
    %163 = vmatpush.msra.mxu0 %v122
    %164 = vmatpush.msra.mxu0 %v121
    %165 = vmatpush.msra.mxu0 %v120
    %166 = vmatpush.msra.mxu0 %v119
    %167 = vmatpush.msra.mxu0 %v118
    %168 = vmatpush.msra.mxu0 %v117
    %169 = vmatmul.f32.gmra.mxu0 %v113
    %v170 = vpop.f32.mrf.mxu0
    %v171 = vadd.f32 %v151, %v170
    %172 = vmatmul.f32.gmra.mxu0 %v115
    %v173 = vpop.f32.mrf.mxu0
    %v174 = vadd.f32 %v151, %v173
    %175 = vdwg.mxu0
    %176 = vmatpush.msra.mxu0 %v148
    %177 = vmatpush.msra.mxu0 %v147
    %178 = vmatpush.msra.mxu0 %v146
    %179 = vmatpush.msra.mxu0 %v145
    %180 = vmatpush.msra.mxu0 %v144
    %181 = vmatpush.msra.mxu0 %v143
    %182 = vmatpush.msra.mxu0 %v142
    %183 = vmatpush.msra.mxu0 %v141
    %184 = vmatpush.msra.mxu0 %v140
    %185 = vmatpush.msra.mxu0 %v139
    %186 = vmatpush.msra.mxu0 %v138
    %187 = vmatpush.msra.mxu0 %v137
    %188 = vmatpush.msra.mxu0 %v136
    %189 = vmatpush.msra.mxu0 %v135
    %190 = vmatpush.msra.mxu0 %v134
    %191 = vmatpush.msra.mxu0 %v133
    %192 = vmatmul.f32.gmra.mxu0 %v114
    %v193 = vpop.f32.mrf.mxu0
    %v194 = vadd.f32 %v171, %v193
    %195 = vmatmul.f32.gmra.mxu0 %v116
    %v196 = vpop.f32.mrf.mxu0
    %v197 = vadd.f32 %v174, %v196
    %198 = vdwg.mxu0
    %v199 = vmax.f32 %v194, 0.0
    %v200 = vmax.f32 %v197, 0.0
    %v201 = vld [vmem:[%s4] sm:$0xff]
    %v202 = vld [vmem:[%s4 + $0x8] sm:$0xff]
    %v203 = vld [vmem:[%s4 + $0x10] sm:$0xff]
    %v204 = vld [vmem:[%s4 + $0x18] sm:$0xff]
    %v205 = vld [vmem:[%s4 + $0x20] sm:$0xff]
    %v206 = vld [vmem:[%s4 + $0x28] sm:$0xff]
    %v207 = vld [vmem:[%s4 + $0x30] sm:$0xff]
    %v208 = vld [vmem:[%s4 + $0x38] sm:$0xff]
    %v209 = vld [vmem:[%s4 + $0x40] sm:$0xff]
    %v210 = vld [vmem:[%s4 + $0x48] sm:$0xff]
    %v211 = vld [vmem:[%s4 + $0x50] sm:$0xff]
    %v212 = vld [vmem:[%s4 + $0x58] sm:$0xff]
    %v213 = vld [vmem:[%s4 + $0x60] sm:$0xff]
    %v214 = vld [vmem:[%s4 + $0x68] sm:$0xff]
    %v215 = vld [vmem:[%s4 + $0x70] sm:$0xff]
    %v216 = vld [vmem:[%s4 + $0x78] sm:$0xff]
    %v217 = vld [vmem:[%s5 + $0x3] sm:$0x1]
    %v219 = vperm.slane %v217, 0
    %221 = vmatpush.msra.mxu0 %v216
    %222 = vmatpush.msra.mxu0 %v215
    %223 = vmatpush.msra.mxu0 %v214
    %224 = vmatpush.msra.mxu0 %v213
    %225 = vmatpush.msra.mxu0 %v212
    %226 = vmatpush.msra.mxu0 %v211
    %227 = vmatpush.msra.mxu0 %v210
    %228 = vmatpush.msra.mxu0 %v209
    %229 = vmatpush.msra.mxu0 %v208
    %230 = vmatpush.msra.mxu0 %v207
    %231 = vmatpush.msra.mxu0 %v206
    %232 = vmatpush.msra.mxu0 %v205
    %233 = vmatpush.msra.mxu0 %v204
    %234 = vmatpush.msra.mxu0 %v203
    %235 = vmatpush.msra.mxu0 %v202
    %236 = vmatpush.msra.mxu0 %v201
    %237 = vmatmul.f32.gmra.mxu0 %v199
    %v238 = vpop.f32.mrf.mxu0
    %v239 = vadd.f32 %v219, %v238
    %240 = vmatmul.f32.gmra.mxu0 %v200
    %v241 = vpop.f32.mrf.mxu0
    %v242 = vadd.f32 %v219, %v241
    %243 = vdwg.mxu0
    %245 = vrot.lane.b32.xlu0 %v242, 120
    %v246 = vpop.permute.xlu0 %245
    %vm247 = vcmask 64512
    %v249 = vsel %vm247, %v239, 0
    %v251 = vsel %vm247, %v246, 0
    %253 = vmatpush.xpose.msra.mxu0 0.0
    %254 = vmatpush.xpose.msra.mxu0 0.0
    %255 = vmatpush.xpose.msra.mxu0 0.0
    %256 = vmatpush.xpose.msra.mxu0 0.0
    %257 = vmatpush.xpose.msra.mxu0 0.0
    %258 = vmatpush.xpose.msra.mxu0 0.0
    %259 = vmatpush.xpose.msra.mxu0 0.0
    %260 = vmatpush.xpose.msra.mxu0 0.0
    %261 = vmatpush.xpose.msra.mxu0 0.0
    %262 = vmatpush.xpose.msra.mxu0 0.0
    %263 = vmatpush.xpose.msra.mxu0 0.0
    %264 = vmatpush.xpose.msra.mxu0 0.0
    %265 = vmatpush.xpose.msra.mxu0 0.0
    %266 = vmatpush.xpose.msra.mxu0 0.0
    %267 = vmatpush.xpose.msra.mxu0 0.0
    %268 = vmatpush.xpose.msra.mxu0 %v251
    %269 = vmatmul.f32.gmra.mxu0 %v249
    %v270 = vpop.f32.mrf.mxu0
    %v271 = vadd.f32 0.0, %v270
    %272 = vdwg.mxu0
    %273 = vst.msk [vmem:[#allocation6] sm:$0xff] %vm247, %v271
    // Predicated region
    $region30: #{tpu_custom_call.1} parent=1 // pred_check
      _
    $region31: #{tpu_custom_call.1} parent=1 // pred_check_branch
      %275 = sbr.rel (0) target = $region33
    $region32: #{tpu_custom_call.1} parent=1 // pred_region
      %277 = vsyncadd [#allocation5], 0
      %s279 = sshll.u32 [#allocation6], 4
      %s280 = int_to_ptr.vmem [resolvable:$true] %s279
      %s281 = sshll.u32 %s6, 4
      %s282 = int_to_ptr.hbm [resolvable:$true] %s281
      %284 = dma.vmem_to_hbm [thread:$0]  %s280, 128, %s282, [#allocation5]
    $region33: #{tpu_custom_call.1} parent=1 // pred_fallthru
      _
    // Predicated region
    $region34: #{tpu_custom_call.1} parent=1 // pred_check
      _
    $region35: #{tpu_custom_call.1} parent=1 // pred_check_branch
      %286 = sbr.rel (0) target = $region37
    $region36: #{tpu_custom_call.1} parent=1 // pred_region
      %288 = dma.done [#allocation5], 128
    $region37: #{tpu_custom_call.1} parent=1 // pred_fallthru
      _
    %289 = vsyncpa [#allocation4], 1
    %290 = vsyncpa [#allocation5], 1

</llo_original>
